<compile_context>
chip_gen: v6e
topology: v6e:2x2x1
jax: 0.10.0
libtpu: 0.0.40
codegen_flags: <defaults>
</compile_context>

<pallas_src>
import functools

import jax
import jax.numpy as jnp
from jax.experimental import pallas as pl
from jax.experimental.pallas import tpu as pltpu

HIDDEN = 256     # hidden width (exactly one 256-wide MXU tile on v6e/v7x)
OUT = 288        # true output width
OUT_PAD = 384    # padded to 3*128 lanes for unmasked vector stores


def _round_up(x, m):
    return ((x + m - 1) // m) * m


def forward_model_kernel(x_ref, a_ref, w1x_ref, w1a_ref, b1_ref,
                         w2_ref, b2_ref, out_ref):
    """Fused MLP block: out = relu(x@W1x + a@W1a + b1) @ W2 + b2.

    Matmul operands are bf16; accumulation, bias-add and ReLU stay in f32.
    """
    h = jnp.dot(x_ref[...], w1x_ref[...], preferred_element_type=jnp.float32)
    h = h + jnp.dot(a_ref[...], w1a_ref[...], preferred_element_type=jnp.float32)
    h = jnp.maximum(h + b1_ref[...], 0.0)
    o = jnp.dot(h.astype(w2_ref.dtype), w2_ref[...],
                preferred_element_type=jnp.float32)
    out_ref[...] = (o + b2_ref[...]).astype(out_ref.dtype)


def prepare_params(params, num_features):
    """One-time prep: split W1 by input (x vs action), pad W2/b2 to 384 lanes,
    cast weights to bf16 (biases stay f32)."""
    w1, b1, w2, b2 = params
    w1x = w1[:num_features].astype(jnp.bfloat16)          # (F, 256)
    w1a = w1[num_features:].astype(jnp.bfloat16)          # (A, 256)
    b1p = b1.reshape(1, HIDDEN).astype(jnp.float32)       # (1, 256)
    w2p = jnp.zeros((HIDDEN, OUT_PAD), jnp.bfloat16)
    w2p = w2p.at[:, :OUT].set(w2.astype(jnp.bfloat16))    # (256, 384)
    b2p = jnp.zeros((1, OUT_PAD), jnp.float32)
    b2p = b2p.at[:, :OUT].set(b2.reshape(1, OUT))         # (1, 384)
    return w1x, w1a, b1p, w2p, b2p


@jax.jit
def forward_model(x, action, prepared):
    """Pallas equivalent of ForwardModel.forward.

    x:      (B, num_features)  float32
    action: (B, num_actions)   float32
    returns (B, 288)           float32
    """
    w1x, w1a, b1, w2, b2 = prepared
    B, F = x.shape
    A = action.shape[1]

    # Batch tiling: TB multiple of 8, capped at 256; weights stay resident.
    Bp = _round_up(B, 8)
    TB = min(Bp, 256)
    Bp = _round_up(Bp, TB)
    if Bp != B:
        x = jnp.pad(x, ((0, Bp - B), (0, 0)))
        action = jnp.pad(action, ((0, Bp - B), (0, 0)))
    xb = x.astype(jnp.bfloat16)
    ab = action.astype(jnp.bfloat16)
    nb = Bp // TB

    flops = 2 * Bp * (F * HIDDEN + A * HIDDEN + HIDDEN * OUT_PAD)
    bytes_accessed = (
        xb.size * 2 + ab.size * 2 + w1x.size * 2 + w1a.size * 2
        + b1.size * 4 + w2.size * 2 + b2.size * 4 + Bp * OUT_PAD * 4
    )

    out = pl.pallas_call(
        forward_model_kernel,
        out_shape=jax.ShapeDtypeStruct((Bp, OUT_PAD), jnp.float32),
        grid=(nb,),
        in_specs=[
            pl.BlockSpec((TB, F), lambda i: (i, 0)),          # x tile
            pl.BlockSpec((TB, A), lambda i: (i, 0)),          # action tile
            pl.BlockSpec((F, HIDDEN), lambda i: (0, 0)),      # W1[:F]
            pl.BlockSpec((A, HIDDEN), lambda i: (0, 0)),      # W1[F:]
            pl.BlockSpec((1, HIDDEN), lambda i: (0, 0)),      # b1
            pl.BlockSpec((HIDDEN, OUT_PAD), lambda i: (0, 0)),# W2 (padded)
            pl.BlockSpec((1, OUT_PAD), lambda i: (0, 0)),     # b2 (padded)
        ],
        out_specs=pl.BlockSpec((TB, OUT_PAD), lambda i: (i, 0)),
        compiler_params=pltpu.CompilerParams(
            dimension_semantics=("parallel",),
            vmem_limit_bytes=32 * 1024 * 1024,
        ),
        cost_estimate=pl.CostEstimate(
            flops=flops, transcendentals=0, bytes_accessed=bytes_accessed),
    )(xb, ab, w1x, w1a, b1, w2, b2)

    return out[:B, :OUT]


def init_params(key, num_features, num_actions):
    """Deterministic init mimicking torch.nn.Linear (uniform +-1/sqrt(fan_in)).
    Weights stored as (in_features, out_features)."""
    d_in = num_features + num_actions
    k1, k2, k3, k4 = jax.random.split(key, 4)
    bound1 = 1.0 / jnp.sqrt(d_in)
    bound2 = 1.0 / jnp.sqrt(256.0)
    w1 = jax.random.uniform(k1, (d_in, 256), jnp.float32, -bound1, bound1)
    b1 = jax.random.uniform(k2, (1, 256), jnp.float32, -bound1, bound1)
    w2 = jax.random.uniform(k3, (256, 288), jnp.float32, -bound2, bound2)
    b2 = jax.random.uniform(k4, (1, 288), jnp.float32, -bound2, bound2)
    return w1, b1, w2, b2


def forward_model_ref(x, action, params):
    w1, b1, w2, b2 = params
    xa = jnp.concatenate([x, action], axis=1)
    h = jnp.maximum(xa @ w1 + b1, 0.0)
    return h @ w2 + b2


if __name__ == "__main__":
    num_features, num_actions, batch = 24, 8, 8

    key = jax.random.PRNGKey(0)
    kx, ka, kp = jax.random.split(key, 3)
    x = jax.random.normal(kx, (batch, num_features), jnp.float32)
    action = jax.random.normal(ka, (batch, num_actions), jnp.float32)
    params = init_params(kp, num_features, num_actions)
    prepared = prepare_params(params, num_features)

    out = forward_model(x, action, prepared)
    out = jax.block_until_ready(out)

    ref = forward_model_ref(x, action, params)
    assert out.shape == (batch, 288), out.shape
    # bf16 MXU operands with f32 accumulation -> loosened tolerance.
    assert jnp.allclose(out, ref, atol=2e-2, rtol=2e-2), (
        float(jnp.max(jnp.abs(out - ref))))

    print("KERNEL_OK")
</pallas_src>

<mosaic_0001>
module attributes {stable_mosaic.version = 11 : i64} {
  func.func @forward_model_kernel(%arg0: i32, %arg1: memref<8x24xbf16, #tpu.memory_space<vmem>>, %arg2: memref<8x8xbf16, #tpu.memory_space<vmem>>, %arg3: memref<24x256xbf16, #tpu.memory_space<vmem>>, %arg4: memref<8x256xbf16, #tpu.memory_space<vmem>>, %arg5: memref<1x256xf32, #tpu.memory_space<vmem>>, %arg6: memref<256x384xbf16, #tpu.memory_space<vmem>>, %arg7: memref<1x384xf32, #tpu.memory_space<vmem>>, %arg8: memref<8x384xf32, #tpu.memory_space<vmem>>) attributes {dimension_semantics = [#tpu.dimension_semantics<parallel>], iteration_bounds = array<i64: 1>, scalar_prefetch = 0 : i64, scratch_operands = 0 : i64, tpu.core_type = #tpu.core_type<tc>, window_params = [{transform_indices = @transform_0, window_bounds = array<i64: 8, 24>}, {transform_indices = @transform_1, window_bounds = array<i64: 8, 8>}, {pipeline_mode = #tpu.pipeline_mode<synchronous>, transform_indices = @transform_2, window_bounds = array<i64: 24, 256>}, {pipeline_mode = #tpu.pipeline_mode<synchronous>, transform_indices = @transform_3, window_bounds = array<i64: 8, 256>}, {pipeline_mode = #tpu.pipeline_mode<synchronous>, transform_indices = @transform_4, window_bounds = array<i64: 1, 256>}, {pipeline_mode = #tpu.pipeline_mode<synchronous>, transform_indices = @transform_5, window_bounds = array<i64: 256, 384>}, {pipeline_mode = #tpu.pipeline_mode<synchronous>, transform_indices = @transform_6, window_bounds = array<i64: 1, 384>}, {transform_indices = @transform_7, window_bounds = array<i64: 8, 384>}]} {
    %c0 = arith.constant 0 : index
    %c0_0 = arith.constant 0 : index
    %0 = vector.load %arg1[%c0, %c0_0] : memref<8x24xbf16, #tpu.memory_space<vmem>>, vector<8x24xbf16>
    %c0_1 = arith.constant 0 : index
    %c0_2 = arith.constant 0 : index
    %1 = vector.load %arg3[%c0_1, %c0_2] : memref<24x256xbf16, #tpu.memory_space<vmem>>, vector<24x256xbf16>
    %cst = arith.constant dense<0.000000e+00> : vector<8x256xf32>
    %2 = tpu.matmul %0, %1, %cst {dimension_numbers = #tpu.dot_dimension_numbers<[1], [0], [0], [1], [0, 0, 1, 1], [], []>} : vector<8x24xbf16>, vector<24x256xbf16>, vector<8x256xf32> -> vector<8x256xf32>
    %c0_3 = arith.constant 0 : index
    %c0_4 = arith.constant 0 : index
    %3 = vector.load %arg2[%c0_3, %c0_4] : memref<8x8xbf16, #tpu.memory_space<vmem>>, vector<8x8xbf16>
    %c0_5 = arith.constant 0 : index
    %c0_6 = arith.constant 0 : index
    %4 = vector.load %arg4[%c0_5, %c0_6] : memref<8x256xbf16, #tpu.memory_space<vmem>>, vector<8x256xbf16>
    %cst_7 = arith.constant dense<0.000000e+00> : vector<8x256xf32>
    %5 = tpu.matmul %3, %4, %cst_7 {dimension_numbers = #tpu.dot_dimension_numbers<[1], [0], [0], [1], [0, 0, 1, 1], [], []>} : vector<8x8xbf16>, vector<8x256xbf16>, vector<8x256xf32> -> vector<8x256xf32>
    %6 = arith.addf %2, %5 : vector<8x256xf32>
    %c0_8 = arith.constant 0 : index
    %c0_9 = arith.constant 0 : index
    %7 = vector.load %arg5[%c0_8, %c0_9] : memref<1x256xf32, #tpu.memory_space<vmem>>, vector<1x256xf32>
    %8 = vector.broadcast %7 : vector<1x256xf32> to vector<8x256xf32>
    %9 = arith.addf %6, %8 : vector<8x256xf32>
    %cst_10 = arith.constant 0.000000e+00 : f32
    %10 = vector.broadcast %cst_10 : f32 to vector<8x256xf32>
    %11 = arith.maximumf %9, %10 : vector<8x256xf32>
    %12 = arith.truncf %11 : vector<8x256xf32> to vector<8x256xbf16>
    %c0_11 = arith.constant 0 : index
    %c0_12 = arith.constant 0 : index
    %13 = vector.load %arg6[%c0_11, %c0_12] : memref<256x384xbf16, #tpu.memory_space<vmem>>, vector<256x384xbf16>
    %cst_13 = arith.constant dense<0.000000e+00> : vector<8x384xf32>
    %14 = tpu.matmul %12, %13, %cst_13 {dimension_numbers = #tpu.dot_dimension_numbers<[1], [0], [0], [1], [0, 0, 1, 1], [], []>} : vector<8x256xbf16>, vector<256x384xbf16>, vector<8x384xf32> -> vector<8x384xf32>
    %c0_14 = arith.constant 0 : index
    %c0_15 = arith.constant 0 : index
    %15 = vector.load %arg7[%c0_14, %c0_15] : memref<1x384xf32, #tpu.memory_space<vmem>>, vector<1x384xf32>
    %16 = vector.broadcast %15 : vector<1x384xf32> to vector<8x384xf32>
    %17 = arith.addf %14, %16 : vector<8x384xf32>
    %c0_16 = arith.constant 0 : index
    %c0_17 = arith.constant 0 : index
    %18 = vector.load %arg8[%c0_16, %c0_17] : memref<8x384xf32, #tpu.memory_space<vmem>>, vector<8x384xf32>
    tpu.vector_store %arg8[%c0_16, %c0_17], %17 {strides = array<i32>} : memref<8x384xf32, #tpu.memory_space<vmem>>, vector<8x384xf32>,
    return
  }
  func.func @transform_0(%arg0: i32) -> (i32, i32) {
    %c0_i32 = arith.constant 0 : i32
    %c0_i32_0 = arith.constant 0 : i32
    return %arg0, %c0_i32 : i32, i32
  }
  func.func @transform_1(%arg0: i32) -> (i32, i32) {
    %c0_i32 = arith.constant 0 : i32
    %c0_i32_0 = arith.constant 0 : i32
    return %arg0, %c0_i32 : i32, i32
  }
  func.func @transform_2(%arg0: i32) -> (i32, i32) {
    %c0_i32 = arith.constant 0 : i32
    %c0_i32_0 = arith.constant 0 : i32
    %c0_i32_1 = arith.constant 0 : i32
    return %c0_i32, %c0_i32_0 : i32, i32
  }
  func.func @transform_3(%arg0: i32) -> (i32, i32) {
    %c0_i32 = arith.constant 0 : i32
    %c0_i32_0 = arith.constant 0 : i32
    %c0_i32_1 = arith.constant 0 : i32
    return %c0_i32, %c0_i32_0 : i32, i32
  }
  func.func @transform_4(%arg0: i32) -> (i32, i32) {
    %c0_i32 = arith.constant 0 : i32
    %c0_i32_0 = arith.constant 0 : i32
    %c0_i32_1 = arith.constant 0 : i32
    return %c0_i32, %c0_i32_0 : i32, i32
  }
  func.func @transform_5(%arg0: i32) -> (i32, i32) {
    %c0_i32 = arith.constant 0 : i32
    %c0_i32_0 = arith.constant 0 : i32
    %c0_i32_1 = arith.constant 0 : i32
    return %c0_i32, %c0_i32_0 : i32, i32
  }
  func.func @transform_6(%arg0: i32) -> (i32, i32) {
    %c0_i32 = arith.constant 0 : i32
    %c0_i32_0 = arith.constant 0 : i32
    %c0_i32_1 = arith.constant 0 : i32
    return %c0_i32, %c0_i32_0 : i32, i32
  }
  func.func @transform_7(%arg0: i32) -> (i32, i32) {
    %c0_i32 = arith.constant 0 : i32
    %c0_i32_0 = arith.constant 0 : i32
    return %arg0, %c0_i32 : i32, i32
  }
}

</mosaic_0001>

<llo_original>
// kernel: forward_model.1
$region0: #{forward_model.1}
  #allocation0 [shape = 'u32[]', space=smem, size = 0x4, offset = 0x4, fixed_abs, tag = 'smem constant byte address 0x4 - core index']
  #allocation1 [shape = 'u32[144,128]{1,0:T(1,128)}', space=vmem, size = 0x12000, scoped, tag = 'internal scratch']
  %s0 = inlined_call_operand.vmem [shape: bf16[8,24], index: 0, kind: input, shape index: {}]
  %s1 = inlined_call_operand.vmem [shape: bf16[8,8], index: 1, kind: input, shape index: {}]
  %s2 = inlined_call_operand.vmem [shape: bf16[24,256], index: 2, kind: input, shape index: {}]
  %s3 = inlined_call_operand.hbm [shape: bf16[8,256], index: 3, kind: input, shape index: {}]
  %s4 = inlined_call_operand.vmem [shape: f32[1,256], index: 4, kind: input, shape index: {}]
  %s5 = inlined_call_operand.hbm [shape: bf16[256,384], index: 5, kind: input, shape index: {}]
  %s6 = inlined_call_operand.vmem [shape: f32[1,384], index: 6, kind: input, shape index: {}]
  %s7 = inlined_call_operand.hbm [shape: f32[8,384], index: 7, kind: output, shape index: {}]
  %s8 = sld [smem:[#allocation0]]
  $region46: #{forward_model.1} parent=0
    _
  %s10 = ssub.s32 1, %s8
  %s11 = scalar_select 0, %s10, %s8
  $region1: #{forward_model.1} parent=0
    #allocation2 [shape = 'u8[4096]{0}', space=vmem, size = 0x1000, scoped, tag = 'input window, operand 3, single buffered']
    #allocation3 [shape = 's32[1]{0}', space=sflag, size = 0x4, scoped, tag = 'scoped memory for forward_model.1']
    #allocation4 [shape = 's32[1]{0}', space=sflag, size = 0x4, scoped, tag = 'scoped memory for forward_model.1']
    #allocation5 [shape = 'u8[196608]{0}', space=vmem, size = 0x30000, scoped, tag = 'input window, operand 5, single buffered']
    #allocation6 [shape = 's32[1]{0}', space=sflag, size = 0x4, scoped, tag = 'scoped memory for forward_model.1']
    #allocation7 [shape = 'u8[12288]{0}', space=vmem, size = 0x3000, scoped, tag = 'output window, operand 0, single buffered']
    %12 = vsyncpa [#allocation3], 0
    %13 = vsyncpa [#allocation6], 0
    %14 = vsyncpa [#allocation4], 0
    // Predicated region
    $region2: #{forward_model.1} parent=1 // pred_check
      _
    $region3: #{forward_model.1} parent=1 // pred_check_branch
      %16 = sbr.rel (0) target = $region5
    $region4: #{forward_model.1} parent=1 // pred_region
      _
    $region5: #{forward_model.1} parent=1 // pred_fallthru
      _
    // Predicated region
    $region6: #{forward_model.1} parent=1 // pred_check
      _
    $region7: #{forward_model.1} parent=1 // pred_check_branch
      %18 = sbr.rel (0) target = $region9
    $region8: #{forward_model.1} parent=1 // pred_region
      _
    $region9: #{forward_model.1} parent=1 // pred_fallthru
      _
    // Predicated region
    $region10: #{forward_model.1} parent=1 // pred_check
      _
    $region11: #{forward_model.1} parent=1 // pred_check_branch
      %20 = sbr.rel (0) target = $region13
    $region12: #{forward_model.1} parent=1 // pred_region
      _
    $region13: #{forward_model.1} parent=1 // pred_fallthru
      _
    // Predicated region
    $region14: #{forward_model.1} parent=1 // pred_check
      _
    $region15: #{forward_model.1} parent=1 // pred_check_branch
      %22 = sbr.rel (0) target = $region17
    $region16: #{forward_model.1} parent=1 // pred_region
      %s24 = ssub.s32 128, 128
      %25 = vsyncadd [#allocation3], %s24
      %s27 = sshll.u32 [#allocation2], 4
      %s28 = int_to_ptr.vmem [resolvable:$true] %s27
      %30 = dma.hbm_to_vmem [thread:$0]  %s3, 128, %s28, [#allocation3]
    $region17: #{forward_model.1} parent=1 // pred_fallthru
      _
    // Predicated region
    $region18: #{forward_model.1} parent=1 // pred_check
      _
    $region19: #{forward_model.1} parent=1 // pred_check_branch
      %32 = sbr.rel (0) target = $region21
    $region20: #{forward_model.1} parent=1 // pred_region
      _
    $region21: #{forward_model.1} parent=1 // pred_fallthru
      _
    // Predicated region
    $region22: #{forward_model.1} parent=1 // pred_check
      _
    $region23: #{forward_model.1} parent=1 // pred_check_branch
      %34 = sbr.rel (0) target = $region25
    $region24: #{forward_model.1} parent=1 // pred_region
      %s36 = ssub.s32 6144, 6144
      %37 = vsyncadd [#allocation6], %s36
      %s38 = sshll.u32 [#allocation5], 4
      %s39 = int_to_ptr.vmem [resolvable:$true] %s38
      %44 = dma.hbm_to_vmem [thread:$0]  %s5, 6144, %s39, [#allocation6], 192, 192, 12
    $region25: #{forward_model.1} parent=1 // pred_fallthru
      _
    // Predicated region
    $region26: #{forward_model.1} parent=1 // pred_check
      _
    $region27: #{forward_model.1} parent=1 // pred_check_branch
      %46 = sbr.rel (0) target = $region29
    $region28: #{forward_model.1} parent=1 // pred_region
      _
    $region29: #{forward_model.1} parent=1 // pred_fallthru
      _
    // Predicated region
    $region30: #{forward_model.1} parent=1 // pred_check
      _
    $region31: #{forward_model.1} parent=1 // pred_check_branch
      %48 = sbr.rel (0) target = $region33
    $region32: #{forward_model.1} parent=1 // pred_region
      %49 = dma.done [#allocation3], 128
    $region33: #{forward_model.1} parent=1 // pred_fallthru
      _
    // Predicated region
    $region34: #{forward_model.1} parent=1 // pred_check
      _
    $region35: #{forward_model.1} parent=1 // pred_check_branch
      %51 = sbr.rel (0) target = $region37
    $region36: #{forward_model.1} parent=1 // pred_region
      %52 = dma.done [#allocation6], 6144
    $region37: #{forward_model.1} parent=1 // pred_fallthru
      _
    %v54 = vld [vmem:[%s0] sm:$0xf]
    %v55 = vld [vmem:[%s2] sm:$0xff]
    %v56 = vld [vmem:[%s2 + $0x8] sm:$0xff]
    %v57 = vld [vmem:[%s2 + $0x10] sm:$0xff]
    %v58 = vld [vmem:[%s1] sm:$0xf]
    %v59 = vld [vmem:[#allocation2] sm:$0xff]
    %v61 = vunpack.c.l.b16 %v59
    %v62 = vunpack.c.h.b16 %v59
    %v63 = vpack.c.b16 %v61, %v61
    %v64 = vpack.c.b16 %v62, %v62
    %vm65 = vcmask 64512
    %v67 = vsel %vm65, %v58, 0
    %vm69 = vcmask 1043456
    %v71 = vsel %vm69, %v63, 0
    %v74 = vsel %vm69, %v64, 0
    %76 = vmatprep.subr.bf16.mxu0 0
    %77 = vmatpush1.bf16.msra.mxu0 0
    %78 = vmatprep.subr.bf16.mxu0 0
    %79 = vmatpush1.bf16.msra.mxu0 0
    %80 = vmatprep.subr.bf16.mxu0 0
    %81 = vmatpush1.bf16.msra.mxu0 0
    %82 = vmatprep.subr.bf16.mxu0 0
    %83 = vmatpush1.bf16.msra.mxu0 0
    %84 = vmatprep.subr.bf16.mxu0 0
    %85 = vmatpush1.bf16.msra.mxu0 0
    %86 = vmatprep.subr.bf16.mxu0 0
    %87 = vmatpush1.bf16.msra.mxu0 0
    %88 = vmatprep.subr.bf16.mxu0 0
    %89 = vmatpush1.bf16.msra.mxu0 0
    %90 = vmatprep.subr.bf16.mxu0 %v74
    %91 = vmatpush1.bf16.msra.mxu0 %v71
    %92 = vmatprep.subr.bf16.mxu0 0
    %93 = vmatpush2.bf16.msra.mxu0 0
    %94 = vmatprep.subr.bf16.mxu0 0
    %95 = vmatpush2.bf16.msra.mxu0 0
    %96 = vmatprep.subr.bf16.mxu0 0
    %97 = vmatpush2.bf16.msra.mxu0 0
    %98 = vmatprep.subr.bf16.mxu0 0
    %99 = vmatpush2.bf16.msra.mxu0 0
    %100 = vmatprep.subr.bf16.mxu0 0
    %101 = vmatpush2.bf16.msra.mxu0 0
    %102 = vmatprep.subr.bf16.mxu0 0
    %103 = vmatpush2.bf16.msra.mxu0 0
    %104 = vmatprep.subr.bf16.mxu0 0
    %105 = vmatpush2.bf16.msra.mxu0 0
    %106 = vmatprep.subr.bf16.mxu0 0
    %107 = vmatpush2.bf16.msra.mxu0 0
    %108 = vmatprep.mubr.bf16.mxu0 0
    %109 = vmatmul.mubr.bf16.gmra.mxu0 %v67
    %v110 = vpop.f32.mrf.mxu0
    %v111 = vadd.f32 0.0, %v110
    %v112 = vpop.f32.mrf.mxu0
    %v113 = vadd.f32 0.0, %v112
    %v114 = vpop.f32.mrf.mxu0
    %v115 = vpop.f32.mrf.mxu0
    %116 = vdwg.mxu0
    %v120 = vunpack.c.l.b16 %v55
    %v121 = vunpack.c.h.b16 %v55
    %v122 = vunpack.c.l.b16 %v56
    %v123 = vunpack.c.h.b16 %v56
    %v124 = vunpack.c.l.b16 %v57
    %v125 = vunpack.c.h.b16 %v57
    %v126 = vpack.c.b16 %v122, %v120
    %v127 = vpack.c.b16 %v123, %v121
    %v128 = vpack.c.b16 %v124, %v124
    %v129 = vpack.c.b16 %v125, %v125
    %vm132 = vcmask 195584
    %v134 = vsel %vm132, %v54, 0
    %v137 = vsel %vm69, %v128, 0
    %v140 = vsel %vm69, %v129, 0
    %142 = vmatprep.subr.bf16.mxu0 0
    %143 = vmatpush1.bf16.msra.mxu0 0
    %144 = vmatprep.subr.bf16.mxu0 0
    %145 = vmatpush1.bf16.msra.mxu0 0
    %146 = vmatprep.subr.bf16.mxu0 0
    %147 = vmatpush1.bf16.msra.mxu0 0
    %148 = vmatprep.subr.bf16.mxu0 0
    %149 = vmatpush1.bf16.msra.mxu0 0
    %150 = vmatprep.subr.bf16.mxu0 0
    %151 = vmatpush1.bf16.msra.mxu0 0
    %152 = vmatprep.subr.bf16.mxu0 0
    %153 = vmatpush1.bf16.msra.mxu0 0
    %154 = vmatprep.subr.bf16.mxu0 %v140
    %155 = vmatpush1.bf16.msra.mxu0 %v137
    %156 = vmatprep.subr.bf16.mxu0 %v127
    %157 = vmatpush1.bf16.msra.mxu0 %v126
    %158 = vmatprep.subr.bf16.mxu0 0
    %159 = vmatpush2.bf16.msra.mxu0 0
    %160 = vmatprep.subr.bf16.mxu0 0
    %161 = vmatpush2.bf16.msra.mxu0 0
    %162 = vmatprep.subr.bf16.mxu0 0
    %163 = vmatpush2.bf16.msra.mxu0 0
    %164 = vmatprep.subr.bf16.mxu0 0
    %165 = vmatpush2.bf16.msra.mxu0 0
    %166 = vmatprep.subr.bf16.mxu0 0
    %167 = vmatpush2.bf16.msra.mxu0 0
    %168 = vmatprep.subr.bf16.mxu0 0
    %169 = vmatpush2.bf16.msra.mxu0 0
    %170 = vmatprep.subr.bf16.mxu0 0
    %171 = vmatpush2.bf16.msra.mxu0 0
    %172 = vmatprep.subr.bf16.mxu0 0
    %173 = vmatpush2.bf16.msra.mxu0 0
    %174 = vmatprep.mubr.bf16.mxu0 0
    %175 = vmatmul.mubr.bf16.gmra.mxu0 %v134
    %v176 = vpop.f32.mrf.mxu0
    %v177 = vadd.f32 %v111, %v176
    %v178 = vpop.f32.mrf.mxu0
    %v179 = vadd.f32 %v113, %v178
    %v180 = vpop.f32.mrf.mxu0
    %v181 = vpop.f32.mrf.mxu0
    %182 = vdwg.mxu0
    %v183 = vld [vmem:[%s4] sm:$0x3]
    %v185 = vlaneseq
    %v186 = vshrl.u32 %v185, 7
    %v187 = vsub.s32 0, %v186
    %v188 = vrot.slane %v183, %v187
    %v189 = vlaneseq
    %v190 = vshrl.u32 %v189, 7
    %v191 = vsub.s32 1, %v190
    %v192 = vrot.slane %v183, %v191
    %v195 = vadd.f32 %v177, %v188
    %v196 = vadd.f32 %v179, %v192
    %v197 = vmax.f32 %v195, 0.0
    %v198 = vmax.f32 %v196, 0.0
    %v199 = vpack.c.bf16 %v197, %v197
    %v200 = vpack.c.bf16 %v198, %v198
    %v201 = vld [vmem:[#allocation5] sm:$0xff]
    %v202 = vld [vmem:[#allocation5 + $0x8] sm:$0xf]
    %v203 = vld [vmem:[#allocation5 + $0xc] sm:$0xff]
    %v204 = vld [vmem:[#allocation5 + $0x14] sm:$0xf]
    %v205 = vld [vmem:[#allocation5 + $0x18] sm:$0xff]
    %v206 = vld [vmem:[#allocation5 + $0x20] sm:$0xf]
    %v207 = vld [vmem:[#allocation5 + $0x24] sm:$0xff]
    %v208 = vld [vmem:[#allocation5 + $0x2c] sm:$0xf]
    %v209 = vld [vmem:[#allocation5 + $0x30] sm:$0xff]
    %v210 = vld [vmem:[#allocation5 + $0x38] sm:$0xf]
    %v211 = vld [vmem:[#allocation5 + $0x3c] sm:$0xff]
    %v212 = vld [vmem:[#allocation5 + $0x44] sm:$0xf]
    %v213 = vld [vmem:[#allocation5 + $0x48] sm:$0xff]
    %v214 = vld [vmem:[#allocation5 + $0x50] sm:$0xf]
    %v215 = vld [vmem:[#allocation5 + $0x54] sm:$0xff]
    %v216 = vld [vmem:[#allocation5 + $0x5c] sm:$0xf]
    %v217 = vld [vmem:[#allocation5 + $0x60] sm:$0xff]
    %v218 = vld [vmem:[#allocation5 + $0x68] sm:$0xf]
    %v219 = vld [vmem:[#allocation5 + $0x6c] sm:$0xff]
    %v220 = vld [vmem:[#allocation5 + $0x74] sm:$0xf]
    %v221 = vld [vmem:[#allocation5 + $0x78] sm:$0xff]
    %v222 = vld [vmem:[#allocation5 + $0x80] sm:$0xf]
    %v223 = vld [vmem:[#allocation5 + $0x84] sm:$0xff]
    %v224 = vld [vmem:[#allocation5 + $0x8c] sm:$0xf]
    %v225 = vld [vmem:[#allocation5 + $0x90] sm:$0xff]
    %v226 = vld [vmem:[#allocation5 + $0x98] sm:$0xf]
    %v227 = vld [vmem:[#allocation5 + $0x9c] sm:$0xff]
    %v228 = vld [vmem:[#allocation5 + $0xa4] sm:$0xf]
    %v229 = vld [vmem:[#allocation5 + $0xa8] sm:$0xff]
    %v230 = vld [vmem:[#allocation5 + $0xb0] sm:$0xf]
    %v231 = vld [vmem:[#allocation5 + $0xb4] sm:$0xff]
    %v232 = vld [vmem:[#allocation5 + $0xbc] sm:$0xf]
    %v233 = vld [vmem:[#allocation5 + $0xc0] sm:$0xff]
    %v234 = vld [vmem:[#allocation5 + $0xc8] sm:$0xf]
    %v235 = vld [vmem:[#allocation5 + $0xcc] sm:$0xff]
    %v236 = vld [vmem:[#allocation5 + $0xd4] sm:$0xf]
    %v237 = vld [vmem:[#allocation5 + $0xd8] sm:$0xff]
    %v238 = vld [vmem:[#allocation5 + $0xe0] sm:$0xf]
    %v239 = vld [vmem:[#allocation5 + $0xe4] sm:$0xff]
    %v240 = vld [vmem:[#allocation5 + $0xec] sm:$0xf]
    %v241 = vld [vmem:[#allocation5 + $0xf0] sm:$0xff]
    %v242 = vld [vmem:[#allocation5 + $0xf8] sm:$0xf]
    %v243 = vld [vmem:[#allocation5 + $0xfc] sm:$0xff]
    %v244 = vld [vmem:[#allocation5 + $0x104] sm:$0xf]
    %v245 = vld [vmem:[#allocation5 + $0x108] sm:$0xff]
    %v246 = vld [vmem:[#allocation5 + $0x110] sm:$0xf]
    %v247 = vld [vmem:[#allocation5 + $0x114] sm:$0xff]
    %v248 = vld [vmem:[#allocation5 + $0x11c] sm:$0xf]
    %v249 = vld [vmem:[#allocation5 + $0x120] sm:$0xff]
    %v250 = vld [vmem:[#allocation5 + $0x128] sm:$0xf]
    %v251 = vld [vmem:[#allocation5 + $0x12c] sm:$0xff]
    %v252 = vld [vmem:[#allocation5 + $0x134] sm:$0xf]
    %v253 = vld [vmem:[#allocation5 + $0x138] sm:$0xff]
    %v254 = vld [vmem:[#allocation5 + $0x140] sm:$0xf]
    %v255 = vld [vmem:[#allocation5 + $0x144] sm:$0xff]
    %v256 = vld [vmem:[#allocation5 + $0x14c] sm:$0xf]
    %v257 = vld [vmem:[#allocation5 + $0x150] sm:$0xff]
    %v258 = vld [vmem:[#allocation5 + $0x158] sm:$0xf]
    %v259 = vld [vmem:[#allocation5 + $0x15c] sm:$0xff]
    %v260 = vld [vmem:[#allocation5 + $0x164] sm:$0xf]
    %v261 = vld [vmem:[#allocation5 + $0x168] sm:$0xff]
    %v262 = vld [vmem:[#allocation5 + $0x170] sm:$0xf]
    %v263 = vld [vmem:[#allocation5 + $0x174] sm:$0xff]
    %v264 = vld [vmem:[#allocation5 + $0x17c] sm:$0xf]
    %v265 = vld [vmem:[%s6] sm:$0x7]
    %v267 = vlaneseq
    %v268 = vshrl.u32 %v267, 7
    %v269 = vsub.s32 0, %v268
    %v270 = vrot.slane %v265, %v269
    %v271 = vlaneseq
    %v272 = vshrl.u32 %v271, 7
    %v273 = vsub.s32 1, %v272
    %v274 = vrot.slane %v265, %v273
    %v275 = vlaneseq
    %v276 = vshrl.u32 %v275, 7
    %v277 = vsub.s32 2, %v276
    %v278 = vrot.slane %v265, %v277
    %v346 = vunpack.c.l.b16 %v201
    %v347 = vunpack.c.h.b16 %v201
    %v348 = vunpack.c.l.b16 %v202
    %v349 = vunpack.c.l.b16 %v203
    %v350 = vunpack.c.h.b16 %v203
    %v351 = vunpack.c.l.b16 %v204
    %v352 = vunpack.c.l.b16 %v205
    %v353 = vunpack.c.h.b16 %v205
    %v354 = vunpack.c.l.b16 %v206
    %v355 = vunpack.c.l.b16 %v207
    %v356 = vunpack.c.h.b16 %v207
    %v357 = vunpack.c.l.b16 %v208
    %v358 = vunpack.c.l.b16 %v209
    %v359 = vunpack.c.h.b16 %v209
    %v360 = vunpack.c.l.b16 %v210
    %v361 = vunpack.c.l.b16 %v211
    %v362 = vunpack.c.h.b16 %v211
    %v363 = vunpack.c.l.b16 %v212
    %v364 = vunpack.c.l.b16 %v213
    %v365 = vunpack.c.h.b16 %v213
    %v366 = vunpack.c.l.b16 %v214
    %v367 = vunpack.c.l.b16 %v215
    %v368 = vunpack.c.h.b16 %v215
    %v369 = vunpack.c.l.b16 %v216
    %v370 = vunpack.c.l.b16 %v217
    %v371 = vunpack.c.h.b16 %v217
    %v372 = vunpack.c.l.b16 %v218
    %v373 = vunpack.c.l.b16 %v219
    %v374 = vunpack.c.h.b16 %v219
    %v375 = vunpack.c.l.b16 %v220
    %v376 = vunpack.c.l.b16 %v221
    %v377 = vunpack.c.h.b16 %v221
    %v378 = vunpack.c.l.b16 %v222
    %v379 = vunpack.c.l.b16 %v223
    %v380 = vunpack.c.h.b16 %v223
    %v381 = vunpack.c.l.b16 %v224
    %v382 = vunpack.c.l.b16 %v225
    %v383 = vunpack.c.h.b16 %v225
    %v384 = vunpack.c.l.b16 %v226
    %v385 = vunpack.c.l.b16 %v227
    %v386 = vunpack.c.h.b16 %v227
    %v387 = vunpack.c.l.b16 %v228
    %v388 = vunpack.c.l.b16 %v229
    %v389 = vunpack.c.h.b16 %v229
    %v390 = vunpack.c.l.b16 %v230
    %v391 = vunpack.c.l.b16 %v231
    %v392 = vunpack.c.h.b16 %v231
    %v393 = vunpack.c.l.b16 %v232
    %v394 = vunpack.c.l.b16 %v233
    %v395 = vunpack.c.h.b16 %v233
    %v396 = vunpack.c.l.b16 %v234
    %v397 = vunpack.c.l.b16 %v235
    %v398 = vunpack.c.h.b16 %v235
    %v399 = vunpack.c.l.b16 %v236
    %v400 = vunpack.c.l.b16 %v237
    %v401 = vunpack.c.h.b16 %v237
    %v402 = vunpack.c.l.b16 %v238
    %v403 = vunpack.c.l.b16 %v239
    %v404 = vunpack.c.h.b16 %v239
    %v405 = vunpack.c.l.b16 %v240
    %v406 = vunpack.c.l.b16 %v241
    %v407 = vunpack.c.h.b16 %v241
    %v408 = vunpack.c.l.b16 %v242
    %v409 = vunpack.c.l.b16 %v243
    %v410 = vunpack.c.h.b16 %v243
    %v411 = vunpack.c.l.b16 %v244
    %v412 = vunpack.c.l.b16 %v245
    %v413 = vunpack.c.h.b16 %v245
    %v414 = vunpack.c.l.b16 %v246
    %v415 = vunpack.c.l.b16 %v247
    %v416 = vunpack.c.h.b16 %v247
    %v417 = vunpack.c.l.b16 %v248
    %v418 = vunpack.c.l.b16 %v249
    %v419 = vunpack.c.h.b16 %v249
    %v420 = vunpack.c.l.b16 %v250
    %v421 = vunpack.c.l.b16 %v251
    %v422 = vunpack.c.h.b16 %v251
    %v423 = vunpack.c.l.b16 %v252
    %v424 = vunpack.c.l.b16 %v253
    %v425 = vunpack.c.h.b16 %v253
    %v426 = vunpack.c.l.b16 %v254
    %v427 = vunpack.c.l.b16 %v255
    %v428 = vunpack.c.h.b16 %v255
    %v429 = vunpack.c.l.b16 %v256
    %v430 = vunpack.c.l.b16 %v257
    %v431 = vunpack.c.h.b16 %v257
    %v432 = vunpack.c.l.b16 %v258
    %v433 = vunpack.c.l.b16 %v259
    %v434 = vunpack.c.h.b16 %v259
    %v435 = vunpack.c.l.b16 %v260
    %v436 = vunpack.c.l.b16 %v261
    %v437 = vunpack.c.h.b16 %v261
    %v438 = vunpack.c.l.b16 %v262
    %v439 = vunpack.c.l.b16 %v263
    %v440 = vunpack.c.h.b16 %v263
    %v441 = vunpack.c.l.b16 %v264
    %v442 = vpack.c.b16 %v349, %v346
    %v443 = vpack.c.b16 %v350, %v347
    %v444 = vpack.c.b16 %v351, %v348
    %v445 = vpack.c.b16 %v355, %v352
    %v446 = vpack.c.b16 %v356, %v353
    %v447 = vpack.c.b16 %v357, %v354
    %v448 = vpack.c.b16 %v361, %v358
    %v449 = vpack.c.b16 %v362, %v359
    %v450 = vpack.c.b16 %v363, %v360
    %v451 = vpack.c.b16 %v367, %v364
    %v452 = vpack.c.b16 %v368, %v365
    %v453 = vpack.c.b16 %v369, %v366
    %v454 = vpack.c.b16 %v373, %v370
    %v455 = vpack.c.b16 %v374, %v371
    %v456 = vpack.c.b16 %v375, %v372
    %v457 = vpack.c.b16 %v379, %v376
    %v458 = vpack.c.b16 %v380, %v377
    %v459 = vpack.c.b16 %v381, %v378
    %v460 = vpack.c.b16 %v385, %v382
    %v461 = vpack.c.b16 %v386, %v383
    %v462 = vpack.c.b16 %v387, %v384
    %v463 = vpack.c.b16 %v391, %v388
    %v464 = vpack.c.b16 %v392, %v389
    %v465 = vpack.c.b16 %v393, %v390
    %v466 = vpack.c.b16 %v397, %v394
    %v467 = vpack.c.b16 %v398, %v395
    %v468 = vpack.c.b16 %v399, %v396
    %v469 = vpack.c.b16 %v403, %v400
    %v470 = vpack.c.b16 %v404, %v401
    %v471 = vpack.c.b16 %v405, %v402
    %v472 = vpack.c.b16 %v409, %v406
    %v473 = vpack.c.b16 %v410, %v407
    %v474 = vpack.c.b16 %v411, %v408
    %v475 = vpack.c.b16 %v415, %v412
    %v476 = vpack.c.b16 %v416, %v413
    %v477 = vpack.c.b16 %v417, %v414
    %v478 = vpack.c.b16 %v421, %v418
    %v479 = vpack.c.b16 %v422, %v419
    %v480 = vpack.c.b16 %v423, %v420
    %v481 = vpack.c.b16 %v427, %v424
    %v482 = vpack.c.b16 %v428, %v425
    %v483 = vpack.c.b16 %v429, %v426
    %v484 = vpack.c.b16 %v433, %v430
    %v485 = vpack.c.b16 %v434, %v431
    %v486 = vpack.c.b16 %v435, %v432
    %v487 = vpack.c.b16 %v439, %v436
    %v488 = vpack.c.b16 %v440, %v437
    %v489 = vpack.c.b16 %v441, %v438
    %538 = vmatprep.subr.bf16.mxu0 %v464
    %539 = vmatpush1.bf16.msra.mxu0 %v463
    %540 = vmatprep.subr.bf16.mxu0 %v461
    %541 = vmatpush1.bf16.msra.mxu0 %v460
    %542 = vmatprep.subr.bf16.mxu0 %v458
    %543 = vmatpush1.bf16.msra.mxu0 %v457
    %544 = vmatprep.subr.bf16.mxu0 %v455
    %545 = vmatpush1.bf16.msra.mxu0 %v454
    %546 = vmatprep.subr.bf16.mxu0 %v452
    %547 = vmatpush1.bf16.msra.mxu0 %v451
    %548 = vmatprep.subr.bf16.mxu0 %v449
    %549 = vmatpush1.bf16.msra.mxu0 %v448
    %550 = vmatprep.subr.bf16.mxu0 %v446
    %551 = vmatpush1.bf16.msra.mxu0 %v445
    %552 = vmatprep.subr.bf16.mxu0 %v443
    %553 = vmatpush1.bf16.msra.mxu0 %v442
    %554 = vmatprep.subr.bf16.mxu0 %v488
    %555 = vmatpush2.bf16.msra.mxu0 %v487
    %556 = vmatprep.subr.bf16.mxu0 %v485
    %557 = vmatpush2.bf16.msra.mxu0 %v484
    %558 = vmatprep.subr.bf16.mxu0 %v482
    %559 = vmatpush2.bf16.msra.mxu0 %v481
    %560 = vmatprep.subr.bf16.mxu0 %v479
    %561 = vmatpush2.bf16.msra.mxu0 %v478
    %562 = vmatprep.subr.bf16.mxu0 %v476
    %563 = vmatpush2.bf16.msra.mxu0 %v475
    %564 = vmatprep.subr.bf16.mxu0 %v473
    %565 = vmatpush2.bf16.msra.mxu0 %v472
    %566 = vmatprep.subr.bf16.mxu0 %v470
    %567 = vmatpush2.bf16.msra.mxu0 %v469
    %568 = vmatprep.subr.bf16.mxu0 %v467
    %569 = vmatpush2.bf16.msra.mxu0 %v466
    %570 = vmatprep.mubr.bf16.mxu0 %v200
    %571 = vmatmul.mubr.bf16.gmra.mxu0 %v199
    %v572 = vpop.f32.mrf.mxu0
    %v573 = vadd.f32 %v270, %v572
    %v574 = vpop.f32.mrf.mxu0
    %v575 = vadd.f32 %v274, %v574
    %v576 = vpop.f32.mrf.mxu0
    %v577 = vpop.f32.mrf.mxu0
    %578 = vdwg.mxu0
    %579 = vmatprep.subr.bf16.mxu0 0
    %580 = vmatpush1.bf16.msra.mxu0 %v465
    %581 = vmatprep.subr.bf16.mxu0 0
    %582 = vmatpush1.bf16.msra.mxu0 %v462
    %583 = vmatprep.subr.bf16.mxu0 0
    %584 = vmatpush1.bf16.msra.mxu0 %v459
    %585 = vmatprep.subr.bf16.mxu0 0
    %586 = vmatpush1.bf16.msra.mxu0 %v456
    %587 = vmatprep.subr.bf16.mxu0 0
    %588 = vmatpush1.bf16.msra.mxu0 %v453
    %589 = vmatprep.subr.bf16.mxu0 0
    %590 = vmatpush1.bf16.msra.mxu0 %v450
    %591 = vmatprep.subr.bf16.mxu0 0
    %592 = vmatpush1.bf16.msra.mxu0 %v447
    %593 = vmatprep.subr.bf16.mxu0 0
    %594 = vmatpush1.bf16.msra.mxu0 %v444
    %595 = vmatprep.subr.bf16.mxu0 0
    %596 = vmatpush2.bf16.msra.mxu0 %v489
    %597 = vmatprep.subr.bf16.mxu0 0
    %598 = vmatpush2.bf16.msra.mxu0 %v486
    %599 = vmatprep.subr.bf16.mxu0 0
    %600 = vmatpush2.bf16.msra.mxu0 %v483
    %601 = vmatprep.subr.bf16.mxu0 0
    %602 = vmatpush2.bf16.msra.mxu0 %v480
    %603 = vmatprep.subr.bf16.mxu0 0
    %604 = vmatpush2.bf16.msra.mxu0 %v477
    %605 = vmatprep.subr.bf16.mxu0 0
    %606 = vmatpush2.bf16.msra.mxu0 %v474
    %607 = vmatprep.subr.bf16.mxu0 0
    %608 = vmatpush2.bf16.msra.mxu0 %v471
    %609 = vmatprep.subr.bf16.mxu0 0
    %610 = vmatpush2.bf16.msra.mxu0 %v468
    %611 = vmatprep.mubr.bf16.mxu0 %v200
    %612 = vmatmul.mubr.bf16.gmra.mxu0 %v199
    %v613 = vpop.f32.mrf.mxu0
    %v614 = vadd.f32 %v278, %v613
    %v615 = vpop.f32.mrf.mxu0
    %v616 = vpop.f32.mrf.mxu0
    %v617 = vpop.f32.mrf.mxu0
    %618 = vdwg.mxu0
    %619 = vst [vmem:[#allocation7] sm:$0xff] %v573
    %620 = vst [vmem:[#allocation7 + $0x8] sm:$0xff] %v575
    %621 = vst [vmem:[#allocation7 + $0x10] sm:$0xff] %v614
    // Predicated region
    $region38: #{forward_model.1} parent=1 // pred_check
      _
    $region39: #{forward_model.1} parent=1 // pred_check_branch
      %623 = sbr.rel (0) target = $region41
    $region40: #{forward_model.1} parent=1 // pred_region
      %s625 = ssub.s32 384, 384
      %626 = vsyncadd [#allocation4], %s625
      %s628 = sshll.u32 [#allocation7], 4
      %s629 = int_to_ptr.vmem [resolvable:$true] %s628
      %631 = dma.vmem_to_hbm [thread:$0]  %s629, 384, %s7, [#allocation4]
    $region41: #{forward_model.1} parent=1 // pred_fallthru
      _
    // Predicated region
    $region42: #{forward_model.1} parent=1 // pred_check
      _
    $region43: #{forward_model.1} parent=1 // pred_check_branch
      %633 = sbr.rel (0) target = $region45
    $region44: #{forward_model.1} parent=1 // pred_region
      %634 = dma.done [#allocation4], 384
    $region45: #{forward_model.1} parent=1 // pred_fallthru
      _
    %635 = vsyncpa [#allocation3], 1
    %636 = vsyncpa [#allocation6], 1
    %637 = vsyncpa [#allocation4], 1

</llo_original>
